<compile_context>
chip_gen: v7x
topology: tpu7x:2x2x1
jax: 0.10.0
libtpu: 0.0.40
codegen_flags: <defaults>
</compile_context>

<pallas_src>
import functools

import jax
import jax.numpy as jnp
from jax.experimental import pallas as pl
from jax.experimental.pallas import tpu as pltpu

LOG_STD_MAX = 2.0
LOG_STD_MIN = -20.0

LANE = 128    # vreg lane width
SUB = 8       # f32 sublane count


def _round_up(x, m):
    return (x + m - 1) // m * m


def _cdiv(a, b):
    return (a + b - 1) // b


# ---------------------------------------------------------------------------
# Pallas kernel: fused actor head on lane-dense tiles.
#   h1     = ReLU(x  @ W1 + b1)
#   h2     = ReLU(h1 @ W2 + b2)
#   head   = h2 @ W_head + b_head          (single 128-lane packed matmul)
#            lanes [0:A]=mu, [A:2A]=mu, [2A:3A]=log_std_raw, rest 0
#   out    = tanh(head)          on lanes [0:A]      (squashed action)
#            head                on lanes [A:2A]     (mean_actions)
#            clamp(head,lo,hi)   on lanes [2A:...]   (log_std)
# ---------------------------------------------------------------------------
def _actor_kernel(feat_ref, w1_ref, w2_ref, wh_ref, bias_ref, out_ref, *,
                  h1_pad, h2_pad, a_dim):
    # f32 features in HBM; cast to MXU-native bf16 in-register.
    # TODO(synk): on v5e (no bf16 VPU) the f32->bf16 packs are pure VALU cost;
    #             keep bf16 only if measured faster there.
    x = feat_ref[...].astype(jnp.bfloat16)                       # (TB, F)

    b1 = bias_ref[:, :h1_pad]                                    # (1, H1_pad) f32
    b2 = bias_ref[:, h1_pad:h1_pad + h2_pad]                     # (1, H2_pad) f32
    bh = bias_ref[:, h1_pad + h2_pad:]                           # (1, HEAD_W) f32

    h1 = jnp.dot(x, w1_ref[...], preferred_element_type=jnp.float32) + b1
    h1 = jnp.maximum(h1, 0.0).astype(jnp.bfloat16)               # nn.ReLU

    h2 = jnp.dot(h1, w2_ref[...], preferred_element_type=jnp.float32) + b2
    h2 = jnp.maximum(h2, 0.0).astype(jnp.bfloat16)               # nn.ReLU

    head = jnp.dot(h2, wh_ref[...], preferred_element_type=jnp.float32) + bh

    # Per-lane select: act | mu | clamped log_std, all in one 128-lane slab.
    lane = jax.lax.broadcasted_iota(jnp.int32, head.shape, 1)
    out = jnp.where(
        lane < a_dim, jnp.tanh(head),
        jnp.where(lane < 2 * a_dim, head,
                  jnp.clip(head, LOG_STD_MIN, LOG_STD_MAX)))     # th.clamp
    out_ref[...] = out


# ---------------------------------------------------------------------------
# One-time parameter packing (hoisted out of the forward call).
# ---------------------------------------------------------------------------
def prepare_params(params):
    w1, w2 = params["w1"], params["w2"]
    w_mu, w_ls = params["w_mu"], params["w_ls"]
    F, H1 = w1.shape
    H2 = w2.shape[1]
    A = w_mu.shape[1]

    H1_pad = _round_up(H1, LANE)
    H2_pad = _round_up(H2, LANE)
    HEAD_W = _round_up(3 * A, LANE)     # act | mu | log_std lanes (>=128)

    def as_row(b):
        return jnp.reshape(jnp.asarray(b, jnp.float32), (1, -1))

    b1 = as_row(params["b1"])
    b2 = as_row(params["b2"])
    b_mu = as_row(params["b_mu"])
    b_ls = as_row(params["b_ls"])
    assert b1.shape[1] == H1 and b2.shape[1] == H2
    assert b_mu.shape[1] == A and b_ls.shape[1] == A

    w1p = jnp.pad(w1, ((0, 0), (0, H1_pad - H1))).astype(jnp.bfloat16)
    w2p = jnp.pad(w2, ((0, H1_pad - H1), (0, H2_pad - H2))).astype(jnp.bfloat16)

    # Packed head: mu weights duplicated into lanes [A:2A] so the kernel never
    # has to lane-shift — one MXU push emits act/mu/logstd sources directly.
    wh = jnp.zeros((H2, HEAD_W), jnp.float32)
    wh = wh.at[:, 0:A].set(w_mu)
    wh = wh.at[:, A:2 * A].set(w_mu)
    wh = wh.at[:, 2 * A:3 * A].set(w_ls)
    whp = jnp.pad(wh, ((0, H2_pad - H2), (0, 0))).astype(jnp.bfloat16)

    bh = jnp.zeros((1, HEAD_W), jnp.float32)
    bh = bh.at[:, 0:A].set(b_mu)
    bh = bh.at[:, A:2 * A].set(b_mu)
    bh = bh.at[:, 2 * A:3 * A].set(b_ls)

    bias = jnp.concatenate(
        [jnp.pad(b1, ((0, 0), (0, H1_pad - H1))),
         jnp.pad(b2, ((0, 0), (0, H2_pad - H2))),
         bh], axis=1).astype(jnp.float32)                        # (1, bias_w)

    return {
        "w1": w1p,                 # (F, H1_pad)      bf16
        "w2": w2p,                 # (H1_pad, H2_pad) bf16
        "w_head": whp,             # (H2_pad, HEAD_W) bf16
        "bias": bias,              # (1, bias_w)      f32
        "dims": (F, H1_pad, H2_pad, A, HEAD_W),
    }


def graph_actor_forward(features, packed):
    """Fused actor head on dense (B, features_dim) features.

    Returns (actions, mean_actions, log_std), each (B, action_dim) f32.
    """
    F, H1_pad, H2_pad, A, HEAD_W = packed["dims"]
    B, Fx = features.shape
    assert Fx == F, (Fx, F)

    # Batch tiling: cap 1024 rows (working set is tiny even for v7x's 64 MiB
    # VMEM), tile rounded to 8 sublanes, padding waste bounded. For batches
    # large enough to matter, force >= 2 grid steps so the "parallel" batch
    # axis can be sharded across v7x's two TensorCores.
    TB_CAP = 1024
    n_tiles = max(1, _cdiv(B, TB_CAP))
    if B >= 16:
        n_tiles = max(n_tiles, 2)
    TB = _round_up(_cdiv(B, n_tiles), SUB)
    B_pad = TB * n_tiles

    feat = features.astype(jnp.float32)
    if B_pad != B:
        feat = jnp.pad(feat, ((0, B_pad - B), (0, 0)))   # rows only; lane dim stays native

    bias_w = H1_pad + H2_pad + HEAD_W
    kernel = functools.partial(_actor_kernel,
                               h1_pad=H1_pad, h2_pad=H2_pad, a_dim=A)

    out = pl.pallas_call(
        kernel,
        out_shape=jax.ShapeDtypeStruct((B_pad, HEAD_W), jnp.float32),
        grid_spec=pltpu.PrefetchScalarGridSpec(
            num_scalar_prefetch=0,
            grid=(n_tiles,),
            in_specs=[
                pl.BlockSpec((TB, F), lambda i: (i, 0)),            # batch-tiled, native lanes
                pl.BlockSpec((F, H1_pad), lambda i: (0, 0)),        # resident (const index map)
                pl.BlockSpec((H1_pad, H2_pad), lambda i: (0, 0)),   # resident
                pl.BlockSpec((H2_pad, HEAD_W), lambda i: (0, 0)),   # resident
                pl.BlockSpec((1, bias_w), lambda i: (0, 0)),        # resident
            ],
            out_specs=pl.BlockSpec((TB, HEAD_W), lambda i: (i, 0)),
        ),
        compiler_params=pltpu.CompilerParams(
            dimension_semantics=("parallel",)),
    )(feat, packed["w1"], packed["w2"], packed["w_head"], packed["bias"])

    # Slice the lane-dense slab back to the (B, A) contract (free plumbing).
    actions = out[:B, 0:A]
    mean_actions = out[:B, A:2 * A]
    log_std = out[:B, 2 * A:3 * A]
    return actions, mean_actions, log_std


# ---------------------------------------------------------------------------
# Glue: extract_features equivalent for the batched-graph case.
#   robot_ids     = first node of each graph
#   robot_states  = node_h[robot_ids, 4:9]                       (B, 5)
#   graph_feats   = GraphExtractor(node_h)[robot_ids]            (B, E)  [stand-in]
#   features      = concat([robot_states, graph_feats], axis=1)  (B, 5 + E)
# ---------------------------------------------------------------------------
def extract_features(node_h, num_nodes, w_ext):
    robot_ids = jnp.concatenate(
        [jnp.zeros((1,), jnp.int32), jnp.cumsum(num_nodes)[:-1]]
    ).astype(jnp.int32)
    robot_states = node_h[robot_ids, 4:9]                        # (B, 5)
    node_embed = jnp.tanh(node_h @ w_ext)                        # stand-in extractor
    graph_feats = node_embed[robot_ids]                          # (B, E)
    return jnp.concatenate([robot_states, graph_feats], axis=1)


# ---------------------------------------------------------------------------
# Deterministic parameter construction (PyTorch nn.Linear shapes, transposed
# to (in, out) for x @ W).
# ---------------------------------------------------------------------------
def init_params(key, features_dim, net_arch, action_dim):
    ks = jax.random.split(key, 4)
    h1, h2 = net_arch

    def lin(k, fan_in, fan_out):
        scale = 1.0 / jnp.sqrt(fan_in)
        return jax.random.uniform(k, (fan_in, fan_out), jnp.float32, -scale, scale)

    return {
        "w1": lin(ks[0], features_dim, h1),
        "b1": jnp.zeros((1, h1), jnp.float32),
        "w2": lin(ks[1], h1, h2),
        "b2": jnp.zeros((1, h2), jnp.float32),
        "w_mu": lin(ks[2], h2, action_dim),
        "b_mu": jnp.zeros((1, action_dim), jnp.float32),
        "w_ls": lin(ks[3], h2, action_dim),
        "b_ls": jnp.full((1, action_dim), -3.0, jnp.float32),
    }


if __name__ == "__main__":
    key = jax.random.PRNGKey(0)
    k_h, k_ext, k_p = jax.random.split(key, 3)

    # Small synthetic batched graph: 2 graphs with 3 and 5 nodes.
    node_feat_dim = 12            # >= 9 so the [4:9] robot-state slice exists
    graph_embed_dim = 27          # features_dim = 5 + 27 = 32
    features_dim = 5 + graph_embed_dim
    net_arch = [32, 32]
    action_dim = 4

    num_nodes = jnp.array([3, 5], dtype=jnp.int32)
    total_nodes = int(num_nodes.sum())
    node_h = jax.random.normal(k_h, (total_nodes, node_feat_dim), jnp.float32)
    w_ext = jax.random.normal(k_ext, (node_feat_dim, graph_embed_dim), jnp.float32) * 0.1

    params = init_params(k_p, features_dim, net_arch, action_dim)
    packed = prepare_params(params)        # one-time packing, hoisted out of forward

    # forward(obs, deterministic=True): squashed deterministic action = tanh(mu)
    features = extract_features(node_h, num_nodes, w_ext)        # (2, 32)
    actions, mean_actions, log_std = graph_actor_forward(features, packed)
    jax.block_until_ready((actions, mean_actions, log_std))

    # Reference in plain f32 JAX.  Tolerance loosened because the kernel feeds
    # bf16 inputs to the MXU (f32 accumulation).
    def ref(feat, p):
        h1 = jnp.maximum(feat @ p["w1"] + p["b1"], 0.0)
        h2 = jnp.maximum(h1 @ p["w2"] + p["b2"], 0.0)
        mu = h2 @ p["w_mu"] + p["b_mu"]
        ls = jnp.clip(h2 @ p["w_ls"] + p["b_ls"], LOG_STD_MIN, LOG_STD_MAX)
        return jnp.tanh(mu), mu, ls

    r_act, r_mu, r_ls = ref(features, params)
    assert actions.shape == (2, action_dim)
    assert mean_actions.shape == (2, action_dim)
    assert log_std.shape == (2, action_dim)
    assert jnp.allclose(actions, r_act, atol=2e-2)
    assert jnp.allclose(mean_actions, r_mu, atol=2e-2)
    assert jnp.allclose(log_std, r_ls, atol=2e-2)

    print("KERNEL_OK")
</pallas_src>

<mosaic_0001>
module attributes {stable_mosaic.version = 11 : i64} {
  func.func @_actor_kernel(%arg0: i32, %arg1: memref<8x32xf32, #tpu.memory_space<vmem>>, %arg2: memref<32x128xbf16, #tpu.memory_space<vmem>>, %arg3: memref<128x128xbf16, #tpu.memory_space<vmem>>, %arg4: memref<128x128xbf16, #tpu.memory_space<vmem>>, %arg5: memref<1x384xf32, #tpu.memory_space<vmem>>, %arg6: memref<8x128xf32, #tpu.memory_space<vmem>>) attributes {dimension_semantics = [#tpu.dimension_semantics<parallel>], iteration_bounds = array<i64: 1>, scalar_prefetch = 0 : i64, scratch_operands = 0 : i64, tpu.core_type = #tpu.core_type<tc>, window_params = [{transform_indices = @transform_0, window_bounds = array<i64: 8, 32>}, {pipeline_mode = #tpu.pipeline_mode<synchronous>, transform_indices = @transform_1, window_bounds = array<i64: 32, 128>}, {pipeline_mode = #tpu.pipeline_mode<synchronous>, transform_indices = @transform_2, window_bounds = array<i64: 128, 128>}, {pipeline_mode = #tpu.pipeline_mode<synchronous>, transform_indices = @transform_3, window_bounds = array<i64: 128, 128>}, {pipeline_mode = #tpu.pipeline_mode<synchronous>, transform_indices = @transform_4, window_bounds = array<i64: 1, 384>}, {transform_indices = @transform_5, window_bounds = array<i64: 8, 128>}]} {
    %c0 = arith.constant 0 : index
    %c0_0 = arith.constant 0 : index
    %0 = vector.load %arg1[%c0, %c0_0] : memref<8x32xf32, #tpu.memory_space<vmem>>, vector<8x32xf32>
    %1 = arith.truncf %0 : vector<8x32xf32> to vector<8x32xbf16>
    %c0_1 = arith.constant 0 : index
    %c0_2 = arith.constant 0 : index
    %2 = vector.load %arg5[%c0_1, %c0_2] : memref<1x384xf32, #tpu.memory_space<vmem>>, vector<1x128xf32>
    %c0_3 = arith.constant 0 : index
    %c128 = arith.constant 128 : index
    %3 = vector.load %arg5[%c0_3, %c128] : memref<1x384xf32, #tpu.memory_space<vmem>>, vector<1x128xf32>
    %c0_4 = arith.constant 0 : index
    %c256 = arith.constant 256 : index
    %4 = vector.load %arg5[%c0_4, %c256] : memref<1x384xf32, #tpu.memory_space<vmem>>, vector<1x128xf32>
    %c0_5 = arith.constant 0 : index
    %c0_6 = arith.constant 0 : index
    %5 = vector.load %arg2[%c0_5, %c0_6] : memref<32x128xbf16, #tpu.memory_space<vmem>>, vector<32x128xbf16>
    %cst = arith.constant dense<0.000000e+00> : vector<8x128xf32>
    %6 = tpu.matmul %1, %5, %cst {dimension_numbers = #tpu.dot_dimension_numbers<[1], [0], [0], [1], [0, 0, 1, 1], [], []>} : vector<8x32xbf16>, vector<32x128xbf16>, vector<8x128xf32> -> vector<8x128xf32>
    %7 = vector.broadcast %2 : vector<1x128xf32> to vector<8x128xf32>
    %8 = arith.addf %6, %7 : vector<8x128xf32>
    %cst_7 = arith.constant 0.000000e+00 : f32
    %9 = vector.broadcast %cst_7 : f32 to vector<8x128xf32>
    %10 = arith.maximumf %8, %9 : vector<8x128xf32>
    %11 = arith.truncf %10 : vector<8x128xf32> to vector<8x128xbf16>
    %c0_8 = arith.constant 0 : index
    %c0_9 = arith.constant 0 : index
    %12 = vector.load %arg3[%c0_8, %c0_9] : memref<128x128xbf16, #tpu.memory_space<vmem>>, vector<128x128xbf16>
    %cst_10 = arith.constant dense<0.000000e+00> : vector<8x128xf32>
    %13 = tpu.matmul %11, %12, %cst_10 {dimension_numbers = #tpu.dot_dimension_numbers<[1], [0], [0], [1], [0, 0, 1, 1], [], []>} : vector<8x128xbf16>, vector<128x128xbf16>, vector<8x128xf32> -> vector<8x128xf32>
    %14 = vector.broadcast %3 : vector<1x128xf32> to vector<8x128xf32>
    %15 = arith.addf %13, %14 : vector<8x128xf32>
    %cst_11 = arith.constant 0.000000e+00 : f32
    %16 = vector.broadcast %cst_11 : f32 to vector<8x128xf32>
    %17 = arith.maximumf %15, %16 : vector<8x128xf32>
    %18 = arith.truncf %17 : vector<8x128xf32> to vector<8x128xbf16>
    %c0_12 = arith.constant 0 : index
    %c0_13 = arith.constant 0 : index
    %19 = vector.load %arg4[%c0_12, %c0_13] : memref<128x128xbf16, #tpu.memory_space<vmem>>, vector<128x128xbf16>
    %cst_14 = arith.constant dense<0.000000e+00> : vector<8x128xf32>
    %20 = tpu.matmul %18, %19, %cst_14 {dimension_numbers = #tpu.dot_dimension_numbers<[1], [0], [0], [1], [0, 0, 1, 1], [], []>} : vector<8x128xbf16>, vector<128x128xbf16>, vector<8x128xf32> -> vector<8x128xf32>
    %21 = vector.broadcast %4 : vector<1x128xf32> to vector<8x128xf32>
    %22 = arith.addf %20, %21 : vector<8x128xf32>
    %23 = tpu.iota {dimensions = array<i32: 1>} : vector<8x128xi32>
    %c4_i32 = arith.constant 4 : i32
    %24 = vector.broadcast %c4_i32 : i32 to vector<8x128xi32>
    %25 = arith.cmpi slt, %23, %24 : vector<8x128xi32>
    %26 = math.tanh %22 : vector<8x128xf32>
    %c8_i32 = arith.constant 8 : i32
    %27 = vector.broadcast %c8_i32 : i32 to vector<8x128xi32>
    %28 = arith.cmpi slt, %23, %27 : vector<8x128xi32>
    %cst_15 = arith.constant -2.000000e+01 : f32
    %cst_16 = arith.constant 2.000000e+00 : f32
    %29 = vector.broadcast %cst_15 : f32 to vector<8x128xf32>
    %30 = arith.maximumf %29, %22 : vector<8x128xf32>
    %31 = vector.broadcast %cst_16 : f32 to vector<8x128xf32>
    %32 = arith.minimumf %31, %30 : vector<8x128xf32>
    %33 = arith.select %28, %22, %32 : vector<8x128xi1>, vector<8x128xf32>
    %34 = arith.select %25, %26, %33 : vector<8x128xi1>, vector<8x128xf32>
    %c0_17 = arith.constant 0 : index
    %c0_18 = arith.constant 0 : index
    %35 = vector.load %arg6[%c0_17, %c0_18] : memref<8x128xf32, #tpu.memory_space<vmem>>, vector<8x128xf32>
    tpu.vector_store %arg6[%c0_17, %c0_18], %34 {strides = array<i32>} : memref<8x128xf32, #tpu.memory_space<vmem>>, vector<8x128xf32>,
    return
  }
  func.func @transform_0(%arg0: i32) -> (i32, i32) {
    %c0_i32 = arith.constant 0 : i32
    %c0_i32_0 = arith.constant 0 : i32
    return %arg0, %c0_i32 : i32, i32
  }
  func.func @transform_1(%arg0: i32) -> (i32, i32) {
    %c0_i32 = arith.constant 0 : i32
    %c0_i32_0 = arith.constant 0 : i32
    %c0_i32_1 = arith.constant 0 : i32
    return %c0_i32, %c0_i32_0 : i32, i32
  }
  func.func @transform_2(%arg0: i32) -> (i32, i32) {
    %c0_i32 = arith.constant 0 : i32
    %c0_i32_0 = arith.constant 0 : i32
    %c0_i32_1 = arith.constant 0 : i32
    return %c0_i32, %c0_i32_0 : i32, i32
  }
  func.func @transform_3(%arg0: i32) -> (i32, i32) {
    %c0_i32 = arith.constant 0 : i32
    %c0_i32_0 = arith.constant 0 : i32
    %c0_i32_1 = arith.constant 0 : i32
    return %c0_i32, %c0_i32_0 : i32, i32
  }
  func.func @transform_4(%arg0: i32) -> (i32, i32) {
    %c0_i32 = arith.constant 0 : i32
    %c0_i32_0 = arith.constant 0 : i32
    %c0_i32_1 = arith.constant 0 : i32
    return %c0_i32, %c0_i32_0 : i32, i32
  }
  func.func @transform_5(%arg0: i32) -> (i32, i32) {
    %c0_i32 = arith.constant 0 : i32
    %c0_i32_0 = arith.constant 0 : i32
    return %arg0, %c0_i32 : i32, i32
  }
}

</mosaic_0001>

<llo_original>
// kernel: tpu_custom_call.1
$region0: #{tpu_custom_call.1}
  #allocation0 [shape = 'u32[]', space=smem, size = 0x4, offset = 0x4, fixed_abs, tag = 'smem constant byte address 0x4 - core index']
  #allocation1 [shape = 'u32[144,128]{1,0:T(1,128)}', space=vmem, size = 0x12000, scoped, tag = 'internal scratch']
  %s0 = inlined_call_operand.hbm [shape: f32[8,32], index: 0, kind: input, shape index: {}]
  %s1 = inlined_call_operand.hbm [shape: bf16[32,128], index: 1, kind: input, shape index: {}]
  %s2 = inlined_call_operand.hbm [shape: bf16[128,128], index: 2, kind: input, shape index: {}]
  %s3 = inlined_call_operand.hbm [shape: bf16[128,128], index: 3, kind: input, shape index: {}]
  %s4 = inlined_call_operand.vmem [shape: f32[1,384], index: 4, kind: input, shape index: {}]
  %s5 = inlined_call_operand.hbm [shape: f32[8,128], index: 5, kind: output, shape index: {}]
  %s6 = sld [smem:[#allocation0]]
  $region46: #{tpu_custom_call.1} parent=0
    _
  %s8 = ssub.s32 1, %s6
  %s9 = scalar_select 0, %s8, %s6
  $region1: #{tpu_custom_call.1} parent=0
    #allocation2 [shape = 'u8[4096]{0}', space=vmem, size = 0x1000, scoped, tag = 'input window, operand 0, single buffered']
    #allocation3 [shape = 's32[1]{0}', space=sflag, size = 0x4, scoped, tag = 'scoped memory for tpu_custom_call.1']
    #allocation4 [shape = 's32[1]{0}', space=sflag, size = 0x4, scoped, tag = 'scoped memory for tpu_custom_call.1']
    #allocation5 [shape = 'u8[8192]{0}', space=vmem, size = 0x2000, scoped, tag = 'input window, operand 1, single buffered']
    #allocation6 [shape = 's32[1]{0}', space=sflag, size = 0x4, scoped, tag = 'scoped memory for tpu_custom_call.1']
    #allocation7 [shape = 'u8[32768]{0}', space=vmem, size = 0x8000, scoped, tag = 'input window, operand 2, single buffered']
    #allocation8 [shape = 'u8[32768]{0}', space=vmem, size = 0x8000, scoped, tag = 'input window, operand 3, single buffered']
    #allocation9 [shape = 's32[1]{0}', space=sflag, size = 0x4, scoped, tag = 'scoped memory for tpu_custom_call.1']
    #allocation10 [shape = 'u8[4096]{0}', space=vmem, size = 0x1000, scoped, tag = 'output window, operand 0, single buffered']
    %10 = vsyncpa [#allocation3], 0
    %11 = vsyncpa [#allocation6], 0
    %12 = vsyncpa [#allocation9], 0
    %13 = vsyncpa [#allocation4], 0
    // Predicated region
    $region2: #{tpu_custom_call.1} parent=1 // pred_check
      _
    $region3: #{tpu_custom_call.1} parent=1 // pred_check_branch
      %15 = sbr.rel (0) target = $region5
    $region4: #{tpu_custom_call.1} parent=1 // pred_region
      %s17 = ssub.s32 128, 128
      %18 = vsyncadd [#allocation3], %s17
      %s20 = sshll.u32 [#allocation2], 4
      %s21 = int_to_ptr.vmem [resolvable:$true] %s20
      %23 = dma.hbm_to_vmem [thread:$0]  %s0, 128, %s21, [#allocation3]
    $region5: #{tpu_custom_call.1} parent=1 // pred_fallthru
      _
    // Predicated region
    $region6: #{tpu_custom_call.1} parent=1 // pred_check
      _
    $region7: #{tpu_custom_call.1} parent=1 // pred_check_branch
      %25 = sbr.rel (0) target = $region9
    $region8: #{tpu_custom_call.1} parent=1 // pred_region
      %s27 = ssub.s32 256, 256
      %28 = vsyncadd [#allocation6], %s27
      %s29 = sshll.u32 [#allocation5], 4
      %s30 = int_to_ptr.vmem [resolvable:$true] %s29
      %35 = dma.hbm_to_vmem [thread:$0]  %s1, 256, %s30, [#allocation6], 64, 64, 4
    $region9: #{tpu_custom_call.1} parent=1 // pred_fallthru
      _
    // Predicated region
    $region10: #{tpu_custom_call.1} parent=1 // pred_check
      _
    $region11: #{tpu_custom_call.1} parent=1 // pred_check_branch
      %37 = sbr.rel (0) target = $region13
    $region12: #{tpu_custom_call.1} parent=1 // pred_region
      %s39 = ssub.s32 1024, 1024
      %40 = vsyncadd [#allocation6], %s39
      %s41 = sshll.u32 [#allocation7], 4
      %s42 = int_to_ptr.vmem [resolvable:$true] %s41
      %47 = dma.hbm_to_vmem [thread:$0]  %s2, 1024, %s42, [#allocation6], 64, 64, 4
    $region13: #{tpu_custom_call.1} parent=1 // pred_fallthru
      _
    // Predicated region
    $region14: #{tpu_custom_call.1} parent=1 // pred_check
      _
    $region15: #{tpu_custom_call.1} parent=1 // pred_check_branch
      %49 = sbr.rel (0) target = $region17
    $region16: #{tpu_custom_call.1} parent=1 // pred_region
      %s51 = ssub.s32 1024, 1024
      %52 = vsyncadd [#allocation9], %s51
      %s53 = sshll.u32 [#allocation8], 4
      %s54 = int_to_ptr.vmem [resolvable:$true] %s53
      %59 = dma.hbm_to_vmem [thread:$0]  %s3, 1024, %s54, [#allocation9], 64, 64, 4
    $region17: #{tpu_custom_call.1} parent=1 // pred_fallthru
      _
    // Predicated region
    $region18: #{tpu_custom_call.1} parent=1 // pred_check
      _
    $region19: #{tpu_custom_call.1} parent=1 // pred_check_branch
      %61 = sbr.rel (0) target = $region21
    $region20: #{tpu_custom_call.1} parent=1 // pred_region
      _
    $region21: #{tpu_custom_call.1} parent=1 // pred_fallthru
      _
    // Predicated region
    $region22: #{tpu_custom_call.1} parent=1 // pred_check
      _
    $region23: #{tpu_custom_call.1} parent=1 // pred_check_branch
      %63 = sbr.rel (0) target = $region25
    $region24: #{tpu_custom_call.1} parent=1 // pred_region
      %64 = dma.done [#allocation3], 128
    $region25: #{tpu_custom_call.1} parent=1 // pred_fallthru
      _
    // Predicated region
    $region26: #{tpu_custom_call.1} parent=1 // pred_check
      _
    $region27: #{tpu_custom_call.1} parent=1 // pred_check_branch
      %66 = sbr.rel (0) target = $region29
    $region28: #{tpu_custom_call.1} parent=1 // pred_region
      %67 = dma.done [#allocation6], 256
    $region29: #{tpu_custom_call.1} parent=1 // pred_fallthru
      _
    // Predicated region
    $region30: #{tpu_custom_call.1} parent=1 // pred_check
      _
    $region31: #{tpu_custom_call.1} parent=1 // pred_check_branch
      %69 = sbr.rel (0) target = $region33
    $region32: #{tpu_custom_call.1} parent=1 // pred_region
      %70 = dma.done [#allocation6], 1024
    $region33: #{tpu_custom_call.1} parent=1 // pred_fallthru
      _
    // Predicated region
    $region34: #{tpu_custom_call.1} parent=1 // pred_check
      _
    $region35: #{tpu_custom_call.1} parent=1 // pred_check_branch
      %72 = sbr.rel (0) target = $region37
    $region36: #{tpu_custom_call.1} parent=1 // pred_region
      %73 = dma.done [#allocation9], 1024
    $region37: #{tpu_custom_call.1} parent=1 // pred_fallthru
      _
    %v75 = vld [vmem:[#allocation2] sm:$0xff]
    %v76 = vpack.c.bf16 %v75, %v75
    %v77 = vld [vmem:[%s4] sm:$0x1]
    %v78 = vld [vmem:[%s4 + $0x1] sm:$0x1]
    %v79 = vld [vmem:[%s4 + $0x2] sm:$0x1]
    %v80 = vld [vmem:[#allocation5] sm:$0xf]
    %v81 = vld [vmem:[#allocation5 + $0x4] sm:$0xf]
    %v82 = vld [vmem:[#allocation5 + $0x8] sm:$0xf]
    %v83 = vld [vmem:[#allocation5 + $0xc] sm:$0xf]
    %v85 = vlaneseq
    %v86 = vshrl.u32 %v85, 7
    %v87 = vsub.s32 0, %v86
    %v88 = vrot.slane %v77, %v87
    %v94 = vunpack.c.l.b16 %v80
    %v95 = vunpack.c.l.b16 %v81
    %v96 = vunpack.c.l.b16 %v82
    %v97 = vunpack.c.l.b16 %v83
    %v98 = vpack.c.b16 %v95, %v94
    %v99 = vpack.c.b16 %v97, %v96
    %vm102 = vcmask 261120
    %v104 = vsel %vm102, %v76, 0
    %106 = vmatprep.subr.bf16.mxu0 0
    %107 = vmatpush1.bf16.msra.mxu0 %v98
    %108 = vmatprep.subr.bf16.mxu0 0
    %109 = vmatpush1.bf16.msra.mxu0 %v99
    %110 = vmatprep.subr.bf16.mxu0 0
    %111 = vmatpush1.bf16.msra.mxu0 0
    %112 = vmatprep.subr.bf16.mxu0 0
    %113 = vmatpush1.bf16.msra.mxu0 0
    %114 = vmatprep.subr.bf16.mxu0 0
    %115 = vmatpush1.bf16.msra.mxu0 0
    %116 = vmatprep.subr.bf16.mxu0 0
    %117 = vmatpush1.bf16.msra.mxu0 0
    %118 = vmatprep.subr.bf16.mxu0 0
    %119 = vmatpush1.bf16.msra.mxu0 0
    %120 = vmatprep.subr.bf16.mxu0 0
    %121 = vmatpush1.bf16.msra.mxu0 0
    %122 = vmatprep.subr.bf16.mxu0 0
    %123 = vmatpush1.bf16.msra.mxu0 0
    %124 = vmatprep.subr.bf16.mxu0 0
    %125 = vmatpush1.bf16.msra.mxu0 0
    %126 = vmatprep.subr.bf16.mxu0 0
    %127 = vmatpush1.bf16.msra.mxu0 0
    %128 = vmatprep.subr.bf16.mxu0 0
    %129 = vmatpush1.bf16.msra.mxu0 0
    %130 = vmatprep.subr.bf16.mxu0 0
    %131 = vmatpush1.bf16.msra.mxu0 0
    %132 = vmatprep.subr.bf16.mxu0 0
    %133 = vmatpush1.bf16.msra.mxu0 0
    %134 = vmatprep.subr.bf16.mxu0 0
    %135 = vmatpush1.bf16.msra.mxu0 0
    %136 = vmatprep.subr.bf16.mxu0 0
    %137 = vmatpush1.bf16.msra.mxu0 0
    %138 = vmatprep.mubr.bf16.mxu0 0
    %139 = vmatmul.mubr.bf16.gmra.mrb[0].mxu0 %v104
    %v140 = vpop.f32.mrb[0].mxu0
    %v141 = vadd.f32 %v88, %v140
    %v142 = vpop.f32.mrb[0].mxu0
    %v143 = vpop.f32.mrb[0].mxu0
    %v144 = vpop.f32.mrb[0].mxu0
    %145 = vdwg.mxu0
    %v146 = vmax.f32 %v141, 0.0
    %v147 = vpack.c.bf16 %v146, %v146
    %v148 = vld [vmem:[#allocation7] sm:$0xf]
    %v149 = vld [vmem:[#allocation7 + $0x4] sm:$0xf]
    %v150 = vld [vmem:[#allocation7 + $0x8] sm:$0xf]
    %v151 = vld [vmem:[#allocation7 + $0xc] sm:$0xf]
    %v152 = vld [vmem:[#allocation7 + $0x10] sm:$0xf]
    %v153 = vld [vmem:[#allocation7 + $0x14] sm:$0xf]
    %v154 = vld [vmem:[#allocation7 + $0x18] sm:$0xf]
    %v155 = vld [vmem:[#allocation7 + $0x1c] sm:$0xf]
    %v156 = vld [vmem:[#allocation7 + $0x20] sm:$0xf]
    %v157 = vld [vmem:[#allocation7 + $0x24] sm:$0xf]
    %v158 = vld [vmem:[#allocation7 + $0x28] sm:$0xf]
    %v159 = vld [vmem:[#allocation7 + $0x2c] sm:$0xf]
    %v160 = vld [vmem:[#allocation7 + $0x30] sm:$0xf]
    %v161 = vld [vmem:[#allocation7 + $0x34] sm:$0xf]
    %v162 = vld [vmem:[#allocation7 + $0x38] sm:$0xf]
    %v163 = vld [vmem:[#allocation7 + $0x3c] sm:$0xf]
    %v165 = vlaneseq
    %v166 = vshrl.u32 %v165, 7
    %v167 = vsub.s32 0, %v166
    %v168 = vrot.slane %v78, %v167
    %v186 = vunpack.c.l.b16 %v148
    %v187 = vunpack.c.l.b16 %v149
    %v188 = vunpack.c.l.b16 %v150
    %v189 = vunpack.c.l.b16 %v151
    %v190 = vunpack.c.l.b16 %v152
    %v191 = vunpack.c.l.b16 %v153
    %v192 = vunpack.c.l.b16 %v154
    %v193 = vunpack.c.l.b16 %v155
    %v194 = vunpack.c.l.b16 %v156
    %v195 = vunpack.c.l.b16 %v157
    %v196 = vunpack.c.l.b16 %v158
    %v197 = vunpack.c.l.b16 %v159
    %v198 = vunpack.c.l.b16 %v160
    %v199 = vunpack.c.l.b16 %v161
    %v200 = vunpack.c.l.b16 %v162
    %v201 = vunpack.c.l.b16 %v163
    %v202 = vpack.c.b16 %v187, %v186
    %v203 = vpack.c.b16 %v189, %v188
    %v204 = vpack.c.b16 %v191, %v190
    %v205 = vpack.c.b16 %v193, %v192
    %v206 = vpack.c.b16 %v195, %v194
    %v207 = vpack.c.b16 %v197, %v196
    %v208 = vpack.c.b16 %v199, %v198
    %v209 = vpack.c.b16 %v201, %v200
    %218 = vmatprep.subr.bf16.mxu0 0
    %219 = vmatpush1.bf16.msra.mxu0 %v202
    %220 = vmatprep.subr.bf16.mxu0 0
    %221 = vmatpush1.bf16.msra.mxu0 %v203
    %222 = vmatprep.subr.bf16.mxu0 0
    %223 = vmatpush1.bf16.msra.mxu0 %v204
    %224 = vmatprep.subr.bf16.mxu0 0
    %225 = vmatpush1.bf16.msra.mxu0 %v205
    %226 = vmatprep.subr.bf16.mxu0 0
    %227 = vmatpush1.bf16.msra.mxu0 %v206
    %228 = vmatprep.subr.bf16.mxu0 0
    %229 = vmatpush1.bf16.msra.mxu0 %v207
    %230 = vmatprep.subr.bf16.mxu0 0
    %231 = vmatpush1.bf16.msra.mxu0 %v208
    %232 = vmatprep.subr.bf16.mxu0 0
    %233 = vmatpush1.bf16.msra.mxu0 %v209
    %234 = vmatprep.subr.bf16.mxu0 0
    %235 = vmatpush1.bf16.msra.mxu0 0
    %236 = vmatprep.subr.bf16.mxu0 0
    %237 = vmatpush1.bf16.msra.mxu0 0
    %238 = vmatprep.subr.bf16.mxu0 0
    %239 = vmatpush1.bf16.msra.mxu0 0
    %240 = vmatprep.subr.bf16.mxu0 0
    %241 = vmatpush1.bf16.msra.mxu0 0
    %242 = vmatprep.subr.bf16.mxu0 0
    %243 = vmatpush1.bf16.msra.mxu0 0
    %244 = vmatprep.subr.bf16.mxu0 0
    %245 = vmatpush1.bf16.msra.mxu0 0
    %246 = vmatprep.subr.bf16.mxu0 0
    %247 = vmatpush1.bf16.msra.mxu0 0
    %248 = vmatprep.subr.bf16.mxu0 0
    %249 = vmatpush1.bf16.msra.mxu0 0
    %250 = vmatprep.mubr.bf16.mxu0 0
    %251 = vmatmul.mubr.bf16.gmra.mrb[0].mxu0 %v147
    %v252 = vpop.f32.mrb[0].mxu0
    %v253 = vadd.f32 %v168, %v252
    %v254 = vpop.f32.mrb[0].mxu0
    %v255 = vpop.f32.mrb[0].mxu0
    %v256 = vpop.f32.mrb[0].mxu0
    %257 = vdwg.mxu0
    %v258 = vmax.f32 %v253, 0.0
    %v259 = vpack.c.bf16 %v258, %v258
    %v260 = vld [vmem:[#allocation8] sm:$0xf]
    %v261 = vld [vmem:[#allocation8 + $0x4] sm:$0xf]
    %v262 = vld [vmem:[#allocation8 + $0x8] sm:$0xf]
    %v263 = vld [vmem:[#allocation8 + $0xc] sm:$0xf]
    %v264 = vld [vmem:[#allocation8 + $0x10] sm:$0xf]
    %v265 = vld [vmem:[#allocation8 + $0x14] sm:$0xf]
    %v266 = vld [vmem:[#allocation8 + $0x18] sm:$0xf]
    %v267 = vld [vmem:[#allocation8 + $0x1c] sm:$0xf]
    %v268 = vld [vmem:[#allocation8 + $0x20] sm:$0xf]
    %v269 = vld [vmem:[#allocation8 + $0x24] sm:$0xf]
    %v270 = vld [vmem:[#allocation8 + $0x28] sm:$0xf]
    %v271 = vld [vmem:[#allocation8 + $0x2c] sm:$0xf]
    %v272 = vld [vmem:[#allocation8 + $0x30] sm:$0xf]
    %v273 = vld [vmem:[#allocation8 + $0x34] sm:$0xf]
    %v274 = vld [vmem:[#allocation8 + $0x38] sm:$0xf]
    %v275 = vld [vmem:[#allocation8 + $0x3c] sm:$0xf]
    %v277 = vlaneseq
    %v278 = vshrl.u32 %v277, 7
    %v279 = vsub.s32 0, %v278
    %v280 = vrot.slane %v79, %v279
    %v298 = vunpack.c.l.b16 %v260
    %v299 = vunpack.c.l.b16 %v261
    %v300 = vunpack.c.l.b16 %v262
    %v301 = vunpack.c.l.b16 %v263
    %v302 = vunpack.c.l.b16 %v264
    %v303 = vunpack.c.l.b16 %v265
    %v304 = vunpack.c.l.b16 %v266
    %v305 = vunpack.c.l.b16 %v267
    %v306 = vunpack.c.l.b16 %v268
    %v307 = vunpack.c.l.b16 %v269
    %v308 = vunpack.c.l.b16 %v270
    %v309 = vunpack.c.l.b16 %v271
    %v310 = vunpack.c.l.b16 %v272
    %v311 = vunpack.c.l.b16 %v273
    %v312 = vunpack.c.l.b16 %v274
    %v313 = vunpack.c.l.b16 %v275
    %v314 = vpack.c.b16 %v299, %v298
    %v315 = vpack.c.b16 %v301, %v300
    %v316 = vpack.c.b16 %v303, %v302
    %v317 = vpack.c.b16 %v305, %v304
    %v318 = vpack.c.b16 %v307, %v306
    %v319 = vpack.c.b16 %v309, %v308
    %v320 = vpack.c.b16 %v311, %v310
    %v321 = vpack.c.b16 %v313, %v312
    %330 = vmatprep.subr.bf16.mxu0 0
    %331 = vmatpush1.bf16.msra.mxu0 %v314
    %332 = vmatprep.subr.bf16.mxu0 0
    %333 = vmatpush1.bf16.msra.mxu0 %v315
    %334 = vmatprep.subr.bf16.mxu0 0
    %335 = vmatpush1.bf16.msra.mxu0 %v316
    %336 = vmatprep.subr.bf16.mxu0 0
    %337 = vmatpush1.bf16.msra.mxu0 %v317
    %338 = vmatprep.subr.bf16.mxu0 0
    %339 = vmatpush1.bf16.msra.mxu0 %v318
    %340 = vmatprep.subr.bf16.mxu0 0
    %341 = vmatpush1.bf16.msra.mxu0 %v319
    %342 = vmatprep.subr.bf16.mxu0 0
    %343 = vmatpush1.bf16.msra.mxu0 %v320
    %344 = vmatprep.subr.bf16.mxu0 0
    %345 = vmatpush1.bf16.msra.mxu0 %v321
    %346 = vmatprep.subr.bf16.mxu0 0
    %347 = vmatpush1.bf16.msra.mxu0 0
    %348 = vmatprep.subr.bf16.mxu0 0
    %349 = vmatpush1.bf16.msra.mxu0 0
    %350 = vmatprep.subr.bf16.mxu0 0
    %351 = vmatpush1.bf16.msra.mxu0 0
    %352 = vmatprep.subr.bf16.mxu0 0
    %353 = vmatpush1.bf16.msra.mxu0 0
    %354 = vmatprep.subr.bf16.mxu0 0
    %355 = vmatpush1.bf16.msra.mxu0 0
    %356 = vmatprep.subr.bf16.mxu0 0
    %357 = vmatpush1.bf16.msra.mxu0 0
    %358 = vmatprep.subr.bf16.mxu0 0
    %359 = vmatpush1.bf16.msra.mxu0 0
    %360 = vmatprep.subr.bf16.mxu0 0
    %361 = vmatpush1.bf16.msra.mxu0 0
    %362 = vmatprep.mubr.bf16.mxu0 0
    %363 = vmatmul.mubr.bf16.gmra.mrb[0].mxu0 %v259
    %v364 = vpop.f32.mrb[0].mxu0
    %v365 = vadd.f32 %v280, %v364
    %v366 = vpop.f32.mrb[0].mxu0
    %v367 = vpop.f32.mrb[0].mxu0
    %v368 = vpop.f32.mrb[0].mxu0
    %369 = vdwg.mxu0
    %v370 = vlaneseq
    %v371 = vand.u32 %v370, 127
    %vm372 = vcmp.lt.s32.totalorder %v371, 4
    %v373 = vtanh.pop %v365
    %vm374 = vcmp.lt.s32.totalorder %v371, 8
    %v375 = vmax.f32 %v365, -20.0
    %v376 = vmin.f32 %v375, 2.0
    %v377 = vsel %vm374, %v365, %v376
    %v378 = vsel %vm372, %v373, %v377
    %379 = vst [vmem:[#allocation10] sm:$0xff] %v378
    // Predicated region
    $region38: #{tpu_custom_call.1} parent=1 // pred_check
      _
    $region39: #{tpu_custom_call.1} parent=1 // pred_check_branch
      %381 = sbr.rel (0) target = $region41
    $region40: #{tpu_custom_call.1} parent=1 // pred_region
      %s383 = ssub.s32 128, 128
      %384 = vsyncadd [#allocation4], %s383
      %s386 = sshll.u32 [#allocation10], 4
      %s387 = int_to_ptr.vmem [resolvable:$true] %s386
      %389 = dma.vmem_to_hbm [thread:$0]  %s387, 128, %s5, [#allocation4]
    $region41: #{tpu_custom_call.1} parent=1 // pred_fallthru
      _
    // Predicated region
    $region42: #{tpu_custom_call.1} parent=1 // pred_check
      _
    $region43: #{tpu_custom_call.1} parent=1 // pred_check_branch
      %391 = sbr.rel (0) target = $region45
    $region44: #{tpu_custom_call.1} parent=1 // pred_region
      %392 = dma.done [#allocation4], 128
    $region45: #{tpu_custom_call.1} parent=1 // pred_fallthru
      _
    %393 = vsyncpa [#allocation3], 1
    %394 = vsyncpa [#allocation6], 1
    %395 = vsyncpa [#allocation9], 1
    %396 = vsyncpa [#allocation4], 1

</llo_original>
